<compile_context>
chip_gen: v7x
topology: tpu7x:2x2x1
jax: 0.10.0
libtpu: 0.0.40
codegen_flags: <defaults>
</compile_context>

<pallas_src>
import jax
import jax.numpy as jnp
from jax.experimental import pallas as pl
from jax.experimental.pallas import tpu as pltpu

HIDDEN = 50  # fixed by the module: nn.Linear(observation, 50)


def _round_up(n, m):
    return ((n + m - 1) // m) * m


def dqn_forward_kernel(x_ref, w1_ref, b1_ref, w2_ref, b2_ref, o_ref):
    x = x_ref[...]          # (TB, obs)      f32
    w1 = w1_ref[...]        # (obs, hidden)  resident
    obs = x.shape[1]

    # Layer 1: Linear(obs, HIDDEN) as an unrolled VPU broadcast-FMA over the
    # tiny, static obs dim; bias b1 is folded in as the accumulator init.
    h = b1_ref[...] + x[:, 0:1] * w1[0:1, :]           # (TB, hidden)
    for k in range(1, obs):                            # obs is small & static
        h = h + x[:, k:k + 1] * w1[k:k + 1, :]
    h = jnp.maximum(h, 0.0)                            # ReLU

    # Layer 2: Linear(HIDDEN, action) on the MXU, f32 accumulation.
    out = jnp.dot(h, w2_ref[...], preferred_element_type=jnp.float32)
    out = out + b2_ref[...]                            # (1, actions) broadcast
    o_ref[...] = out.astype(o_ref.dtype)


def dqn_forward(x, w1, b1, w2, b2, *, block_b=1024):
    B, obs = x.shape
    hidden = w1.shape[1]
    n_actions = w2.shape[1]

    b1_2d = b1.reshape(1, hidden)
    b2_2d = b2.reshape(1, n_actions)

    # Batch tile: multiple of 8 sublanes; capped at block_b (default 1024) so
    # 2x double-buffered x/out tiles + the (TB, hidden) temp stay well inside
    # the default scoped-VMEM budget on every TPU generation (incl. v7x).
    TB = min(block_b, _round_up(B, 8))
    B_pad = _round_up(B, TB)
    if B_pad != B:
        x = jnp.pad(x, ((0, B_pad - B), (0, 0)))

    grid = (B_pad // TB,)

    # Constant index_map -> fetched once, stays VMEM-resident across the grid.
    resident = lambda shape: pl.BlockSpec(shape, lambda i: (0, 0))

    out = pl.pallas_call(
        dqn_forward_kernel,
        out_shape=jax.ShapeDtypeStruct((B_pad, n_actions), jnp.float32),
        grid=grid,
        in_specs=[
            pl.BlockSpec((TB, obs), lambda i: (i, 0)),   # x streamed per tile
            resident((obs, hidden)),                     # w1
            resident((1, hidden)),                       # b1
            resident((hidden, n_actions)),               # w2
            resident((1, n_actions)),                    # b2
        ],
        out_specs=pl.BlockSpec((TB, n_actions), lambda i: (i, 0)),
        compiler_params=pltpu.CompilerParams(
            dimension_semantics=("parallel",)),          # megacore on v7x
    )(x, w1, b1_2d, w2, b2_2d)

    return out[:B] if B_pad != B else out


def init_params(key, observation, action):
    """Deterministic init mirroring nn.Linear's uniform(-1/sqrt(fan_in), +)."""
    k1, k2, k3, k4 = jax.random.split(key, 4)
    bound1 = 1.0 / jnp.sqrt(jnp.float32(observation))
    bound2 = 1.0 / jnp.sqrt(jnp.float32(HIDDEN))
    # Stored transposed vs. PyTorch's (out_features, in_features).
    w1 = jax.random.uniform(k1, (observation, HIDDEN), jnp.float32, -bound1, bound1)
    b1 = jax.random.uniform(k2, (HIDDEN,), jnp.float32, -bound1, bound1)
    w2 = jax.random.uniform(k3, (HIDDEN, action), jnp.float32, -bound2, bound2)
    b2 = jax.random.uniform(k4, (action,), jnp.float32, -bound2, bound2)
    return w1, b1, w2, b2


if __name__ == "__main__":
    key = jax.random.PRNGKey(0)
    k_params, k_x = jax.random.split(key)

    batch = 50         # matches the module's replay sample_size
    observation = 4    # CartPole-style observation vector
    action = 2

    w1, b1, w2, b2 = init_params(k_params, observation, action)
    x = jax.random.normal(k_x, (batch, observation), jnp.float32)

    out = dqn_forward(x, w1, b1, w2, b2)
    out = jax.block_until_ready(out)

    # Reference check in plain JAX (same math as the PyTorch forward).
    ref = jnp.maximum(x @ w1 + b1, 0.0) @ w2 + b2
    assert out.shape == (batch, action)
    assert jnp.allclose(out, ref, atol=1e-5, rtol=1e-5)

    print("KERNEL_OK")
</pallas_src>

<mosaic_0001>
module attributes {stable_mosaic.version = 11 : i64} {
  func.func @dqn_forward_kernel(%arg0: i32, %arg1: memref<56x4xf32, #tpu.memory_space<vmem>>, %arg2: memref<4x50xf32, #tpu.memory_space<vmem>>, %arg3: memref<1x50xf32, #tpu.memory_space<vmem>>, %arg4: memref<50x2xf32, #tpu.memory_space<vmem>>, %arg5: memref<1x2xf32, #tpu.memory_space<vmem>>, %arg6: memref<56x2xf32, #tpu.memory_space<vmem>>) attributes {dimension_semantics = [#tpu.dimension_semantics<parallel>], iteration_bounds = array<i64: 1>, scalar_prefetch = 0 : i64, scratch_operands = 0 : i64, tpu.core_type = #tpu.core_type<tc>, window_params = [{transform_indices = @transform_0, window_bounds = array<i64: 56, 4>}, {pipeline_mode = #tpu.pipeline_mode<synchronous>, transform_indices = @transform_1, window_bounds = array<i64: 4, 50>}, {pipeline_mode = #tpu.pipeline_mode<synchronous>, transform_indices = @transform_2, window_bounds = array<i64: 1, 50>}, {pipeline_mode = #tpu.pipeline_mode<synchronous>, transform_indices = @transform_3, window_bounds = array<i64: 50, 2>}, {pipeline_mode = #tpu.pipeline_mode<synchronous>, transform_indices = @transform_4, window_bounds = array<i64: 1, 2>}, {transform_indices = @transform_5, window_bounds = array<i64: 56, 2>}]} {
    %c0 = arith.constant 0 : index
    %c0_0 = arith.constant 0 : index
    %0 = vector.load %arg1[%c0, %c0_0] : memref<56x4xf32, #tpu.memory_space<vmem>>, vector<56x4xf32>
    %c0_1 = arith.constant 0 : index
    %c0_2 = arith.constant 0 : index
    %1 = vector.load %arg2[%c0_1, %c0_2] : memref<4x50xf32, #tpu.memory_space<vmem>>, vector<4x50xf32>
    %c0_3 = arith.constant 0 : index
    %c0_4 = arith.constant 0 : index
    %2 = vector.load %arg3[%c0_3, %c0_4] : memref<1x50xf32, #tpu.memory_space<vmem>>, vector<1x50xf32>
    %3 = vector.extract_strided_slice %0 {offsets = [0, 0], sizes = [56, 1], strides = [1, 1]} : vector<56x4xf32> to vector<56x1xf32>
    %4 = vector.extract_strided_slice %1 {offsets = [0, 0], sizes = [1, 50], strides = [1, 1]} : vector<4x50xf32> to vector<1x50xf32>
    %5 = vector.broadcast %3 : vector<56x1xf32> to vector<56x50xf32>
    %6 = vector.broadcast %4 : vector<1x50xf32> to vector<56x50xf32>
    %7 = arith.mulf %5, %6 : vector<56x50xf32>
    %8 = vector.broadcast %2 : vector<1x50xf32> to vector<56x50xf32>
    %9 = arith.addf %8, %7 : vector<56x50xf32>
    %10 = vector.extract_strided_slice %0 {offsets = [0, 1], sizes = [56, 1], strides = [1, 1]} : vector<56x4xf32> to vector<56x1xf32>
    %11 = vector.extract_strided_slice %1 {offsets = [1, 0], sizes = [1, 50], strides = [1, 1]} : vector<4x50xf32> to vector<1x50xf32>
    %12 = vector.broadcast %10 : vector<56x1xf32> to vector<56x50xf32>
    %13 = vector.broadcast %11 : vector<1x50xf32> to vector<56x50xf32>
    %14 = arith.mulf %12, %13 : vector<56x50xf32>
    %15 = arith.addf %9, %14 : vector<56x50xf32>
    %16 = vector.extract_strided_slice %0 {offsets = [0, 2], sizes = [56, 1], strides = [1, 1]} : vector<56x4xf32> to vector<56x1xf32>
    %17 = vector.extract_strided_slice %1 {offsets = [2, 0], sizes = [1, 50], strides = [1, 1]} : vector<4x50xf32> to vector<1x50xf32>
    %18 = vector.broadcast %16 : vector<56x1xf32> to vector<56x50xf32>
    %19 = vector.broadcast %17 : vector<1x50xf32> to vector<56x50xf32>
    %20 = arith.mulf %18, %19 : vector<56x50xf32>
    %21 = arith.addf %15, %20 : vector<56x50xf32>
    %22 = vector.extract_strided_slice %0 {offsets = [0, 3], sizes = [56, 1], strides = [1, 1]} : vector<56x4xf32> to vector<56x1xf32>
    %23 = vector.extract_strided_slice %1 {offsets = [3, 0], sizes = [1, 50], strides = [1, 1]} : vector<4x50xf32> to vector<1x50xf32>
    %24 = vector.broadcast %22 : vector<56x1xf32> to vector<56x50xf32>
    %25 = vector.broadcast %23 : vector<1x50xf32> to vector<56x50xf32>
    %26 = arith.mulf %24, %25 : vector<56x50xf32>
    %27 = arith.addf %21, %26 : vector<56x50xf32>
    %cst = arith.constant 0.000000e+00 : f32
    %28 = vector.broadcast %cst : f32 to vector<56x50xf32>
    %29 = arith.maximumf %27, %28 : vector<56x50xf32>
    %c0_5 = arith.constant 0 : index
    %c0_6 = arith.constant 0 : index
    %30 = vector.load %arg4[%c0_5, %c0_6] : memref<50x2xf32, #tpu.memory_space<vmem>>, vector<50x2xf32>
    %cst_7 = arith.constant dense<0.000000e+00> : vector<56x2xf32>
    %31 = tpu.matmul %29, %30, %cst_7 {dimension_numbers = #tpu.dot_dimension_numbers<[1], [0], [0], [1], [0, 0, 1, 1], [], []>} : vector<56x50xf32>, vector<50x2xf32>, vector<56x2xf32> -> vector<56x2xf32>
    %c0_8 = arith.constant 0 : index
    %c0_9 = arith.constant 0 : index
    %32 = vector.load %arg5[%c0_8, %c0_9] : memref<1x2xf32, #tpu.memory_space<vmem>>, vector<1x2xf32>
    %33 = vector.broadcast %32 : vector<1x2xf32> to vector<56x2xf32>
    %34 = arith.addf %31, %33 : vector<56x2xf32>
    %c0_10 = arith.constant 0 : index
    %c0_11 = arith.constant 0 : index
    %35 = vector.load %arg6[%c0_10, %c0_11] : memref<56x2xf32, #tpu.memory_space<vmem>>, vector<56x2xf32>
    tpu.vector_store %arg6[%c0_10, %c0_11], %34 {strides = array<i32>} : memref<56x2xf32, #tpu.memory_space<vmem>>, vector<56x2xf32>,
    return
  }
  func.func @transform_0(%arg0: i32) -> (i32, i32) {
    %c0_i32 = arith.constant 0 : i32
    %c0_i32_0 = arith.constant 0 : i32
    return %arg0, %c0_i32 : i32, i32
  }
  func.func @transform_1(%arg0: i32) -> (i32, i32) {
    %c0_i32 = arith.constant 0 : i32
    %c0_i32_0 = arith.constant 0 : i32
    %c0_i32_1 = arith.constant 0 : i32
    return %c0_i32, %c0_i32_0 : i32, i32
  }
  func.func @transform_2(%arg0: i32) -> (i32, i32) {
    %c0_i32 = arith.constant 0 : i32
    %c0_i32_0 = arith.constant 0 : i32
    %c0_i32_1 = arith.constant 0 : i32
    return %c0_i32, %c0_i32_0 : i32, i32
  }
  func.func @transform_3(%arg0: i32) -> (i32, i32) {
    %c0_i32 = arith.constant 0 : i32
    %c0_i32_0 = arith.constant 0 : i32
    %c0_i32_1 = arith.constant 0 : i32
    return %c0_i32, %c0_i32_0 : i32, i32
  }
  func.func @transform_4(%arg0: i32) -> (i32, i32) {
    %c0_i32 = arith.constant 0 : i32
    %c0_i32_0 = arith.constant 0 : i32
    %c0_i32_1 = arith.constant 0 : i32
    return %c0_i32, %c0_i32_0 : i32, i32
  }
  func.func @transform_5(%arg0: i32) -> (i32, i32) {
    %c0_i32 = arith.constant 0 : i32
    %c0_i32_0 = arith.constant 0 : i32
    return %arg0, %c0_i32 : i32, i32
  }
}

</mosaic_0001>

<llo_original>
// kernel: tpu_custom_call.1
$region0: #{tpu_custom_call.1}
  #allocation0 [shape = 'u32[]', space=smem, size = 0x4, offset = 0x4, fixed_abs, tag = 'smem constant byte address 0x4 - core index']
  #allocation1 [shape = 'u32[144,128]{1,0:T(1,128)}', space=vmem, size = 0x12000, scoped, tag = 'internal scratch']
  %s0 = inlined_call_operand.vmem [shape: f32[56,4], index: 0, kind: input, shape index: {}]
  %s1 = inlined_call_operand.vmem [shape: f32[4,50], index: 1, kind: input, shape index: {}]
  %s2 = inlined_call_operand.vmem [shape: f32[1,50], index: 2, kind: input, shape index: {}]
  %s3 = inlined_call_operand.vmem [shape: f32[50,2], index: 3, kind: input, shape index: {}]
  %s4 = inlined_call_operand.vmem [shape: f32[1,2], index: 4, kind: input, shape index: {}]
  %s5 = inlined_call_operand.vmem [shape: f32[56,2], index: 5, kind: output, shape index: {}]
  %s6 = sld [smem:[#allocation0]]
  $region30: #{tpu_custom_call.1} parent=0
    _
  %s8 = ssub.s32 1, %s6
  %s9 = scalar_select 0, %s8, %s6
  // Predicated region
  $region2: #{tpu_custom_call.1} parent=0 // pred_check
    _
  $region3: #{tpu_custom_call.1} parent=0 // pred_check_branch
    %11 = sbr.rel (0) target = $region5
  $region4: #{tpu_custom_call.1} parent=0 // pred_region
    _
  $region5: #{tpu_custom_call.1} parent=0 // pred_fallthru
    _
  // Predicated region
  $region6: #{tpu_custom_call.1} parent=0 // pred_check
    _
  $region7: #{tpu_custom_call.1} parent=0 // pred_check_branch
    %13 = sbr.rel (0) target = $region9
  $region8: #{tpu_custom_call.1} parent=0 // pred_region
    _
  $region9: #{tpu_custom_call.1} parent=0 // pred_fallthru
    _
  // Predicated region
  $region10: #{tpu_custom_call.1} parent=0 // pred_check
    _
  $region11: #{tpu_custom_call.1} parent=0 // pred_check_branch
    %15 = sbr.rel (0) target = $region13
  $region12: #{tpu_custom_call.1} parent=0 // pred_region
    _
  $region13: #{tpu_custom_call.1} parent=0 // pred_fallthru
    _
  // Predicated region
  $region14: #{tpu_custom_call.1} parent=0 // pred_check
    _
  $region15: #{tpu_custom_call.1} parent=0 // pred_check_branch
    %17 = sbr.rel (0) target = $region17
  $region16: #{tpu_custom_call.1} parent=0 // pred_region
    _
  $region17: #{tpu_custom_call.1} parent=0 // pred_fallthru
    _
  // Predicated region
  $region18: #{tpu_custom_call.1} parent=0 // pred_check
    _
  $region19: #{tpu_custom_call.1} parent=0 // pred_check_branch
    %19 = sbr.rel (0) target = $region21
  $region20: #{tpu_custom_call.1} parent=0 // pred_region
    _
  $region21: #{tpu_custom_call.1} parent=0 // pred_fallthru
    _
  %v20 = vld [vmem:[%s0] sm:$0xff]
  %v21 = vld [vmem:[%s0 + $0x8] sm:$0xff]
  %v22 = vld [vmem:[%s0 + $0x10] sm:$0xff]
  %v23 = vld [vmem:[%s0 + $0x18] sm:$0xff]
  %v24 = vld [vmem:[%s0 + $0x20] sm:$0xff]
  %v25 = vld [vmem:[%s0 + $0x28] sm:$0xff]
  %v26 = vld [vmem:[%s0 + $0x30] sm:$0xff]
  %v27 = vld [vmem:[%s1] sm:$0xf]
  %v28 = vld [vmem:[%s2] sm:$0x1]
  %30 = vset.pattern.permute.xlu0 0
  %31 = vperm.xlu0 %30, %v20
  %v32 = vpop.permute.xlu0 %31
  %35 = vset.pattern.permute.xlu0 0
  %36 = vperm.xlu0 %35, %v21
  %v37 = vpop.permute.xlu0 %36
  %40 = vset.pattern.permute.xlu0 0
  %41 = vperm.xlu0 %40, %v22
  %v42 = vpop.permute.xlu0 %41
  %45 = vset.pattern.permute.xlu0 0
  %46 = vperm.xlu0 %45, %v23
  %v47 = vpop.permute.xlu0 %46
  %50 = vset.pattern.permute.xlu0 0
  %51 = vperm.xlu0 %50, %v24
  %v52 = vpop.permute.xlu0 %51
  %55 = vset.pattern.permute.xlu0 0
  %56 = vperm.xlu0 %55, %v25
  %v57 = vpop.permute.xlu0 %56
  %60 = vset.pattern.permute.xlu0 0
  %61 = vperm.xlu0 %60, %v26
  %v62 = vpop.permute.xlu0 %61
  %v64 = vlaneseq
  %v65 = vshrl.u32 %v64, 7
  %v66 = vsub.s32 0, %v65
  %v67 = vrot.slane %v27, %v66
  %v68 = vmul.f32 %v32, %v67
  %v69 = vmul.f32 %v37, %v67
  %v70 = vmul.f32 %v42, %v67
  %v71 = vmul.f32 %v47, %v67
  %v72 = vmul.f32 %v52, %v67
  %v73 = vmul.f32 %v57, %v67
  %v74 = vmul.f32 %v62, %v67
  %v76 = vlaneseq
  %v77 = vshrl.u32 %v76, 7
  %v78 = vsub.s32 0, %v77
  %v79 = vrot.slane %v28, %v78
  %v81 = vadd.f32 %v79, %v68
  %v82 = vadd.f32 %v79, %v69
  %v83 = vadd.f32 %v79, %v70
  %v84 = vadd.f32 %v79, %v71
  %v85 = vadd.f32 %v79, %v72
  %v86 = vadd.f32 %v79, %v73
  %v87 = vadd.f32 %v79, %v74
  %88 = vset.pattern.permute.xlu0 1
  %89 = vperm.xlu0 %88, %v20
  %v90 = vpop.permute.xlu0 %89
  %92 = vset.pattern.permute.xlu0 1
  %93 = vperm.xlu0 %92, %v21
  %v94 = vpop.permute.xlu0 %93
  %96 = vset.pattern.permute.xlu0 1
  %97 = vperm.xlu0 %96, %v22
  %v98 = vpop.permute.xlu0 %97
  %100 = vset.pattern.permute.xlu0 1
  %101 = vperm.xlu0 %100, %v23
  %v102 = vpop.permute.xlu0 %101
  %104 = vset.pattern.permute.xlu0 1
  %105 = vperm.xlu0 %104, %v24
  %v106 = vpop.permute.xlu0 %105
  %108 = vset.pattern.permute.xlu0 1
  %109 = vperm.xlu0 %108, %v25
  %v110 = vpop.permute.xlu0 %109
  %112 = vset.pattern.permute.xlu0 1
  %113 = vperm.xlu0 %112, %v26
  %v114 = vpop.permute.xlu0 %113
  %v116 = vlaneseq
  %v117 = vshrl.u32 %v116, 7
  %v118 = vsub.s32 1, %v117
  %v119 = vrot.slane %v27, %v118
  %v120 = vmul.f32 %v90, %v119
  %v121 = vmul.f32 %v94, %v119
  %v122 = vmul.f32 %v98, %v119
  %v123 = vmul.f32 %v102, %v119
  %v124 = vmul.f32 %v106, %v119
  %v125 = vmul.f32 %v110, %v119
  %v126 = vmul.f32 %v114, %v119
  %v127 = vadd.f32 %v81, %v120
  %v128 = vadd.f32 %v82, %v121
  %v129 = vadd.f32 %v83, %v122
  %v130 = vadd.f32 %v84, %v123
  %v131 = vadd.f32 %v85, %v124
  %v132 = vadd.f32 %v86, %v125
  %v133 = vadd.f32 %v87, %v126
  %134 = vset.pattern.permute.xlu0 2
  %135 = vperm.xlu0 %134, %v20
  %v136 = vpop.permute.xlu0 %135
  %138 = vset.pattern.permute.xlu0 2
  %139 = vperm.xlu0 %138, %v21
  %v140 = vpop.permute.xlu0 %139
  %142 = vset.pattern.permute.xlu0 2
  %143 = vperm.xlu0 %142, %v22
  %v144 = vpop.permute.xlu0 %143
  %146 = vset.pattern.permute.xlu0 2
  %147 = vperm.xlu0 %146, %v23
  %v148 = vpop.permute.xlu0 %147
  %150 = vset.pattern.permute.xlu0 2
  %151 = vperm.xlu0 %150, %v24
  %v152 = vpop.permute.xlu0 %151
  %154 = vset.pattern.permute.xlu0 2
  %155 = vperm.xlu0 %154, %v25
  %v156 = vpop.permute.xlu0 %155
  %158 = vset.pattern.permute.xlu0 2
  %159 = vperm.xlu0 %158, %v26
  %v160 = vpop.permute.xlu0 %159
  %v162 = vlaneseq
  %v163 = vshrl.u32 %v162, 7
  %v164 = vsub.s32 2, %v163
  %v165 = vrot.slane %v27, %v164
  %v166 = vmul.f32 %v136, %v165
  %v167 = vmul.f32 %v140, %v165
  %v168 = vmul.f32 %v144, %v165
  %v169 = vmul.f32 %v148, %v165
  %v170 = vmul.f32 %v152, %v165
  %v171 = vmul.f32 %v156, %v165
  %v172 = vmul.f32 %v160, %v165
  %v173 = vadd.f32 %v127, %v166
  %v174 = vadd.f32 %v128, %v167
  %v175 = vadd.f32 %v129, %v168
  %v176 = vadd.f32 %v130, %v169
  %v177 = vadd.f32 %v131, %v170
  %v178 = vadd.f32 %v132, %v171
  %v179 = vadd.f32 %v133, %v172
  %180 = vset.pattern.permute.xlu0 3
  %181 = vperm.xlu0 %180, %v20
  %v182 = vpop.permute.xlu0 %181
  %184 = vset.pattern.permute.xlu0 3
  %185 = vperm.xlu0 %184, %v21
  %v186 = vpop.permute.xlu0 %185
  %188 = vset.pattern.permute.xlu0 3
  %189 = vperm.xlu0 %188, %v22
  %v190 = vpop.permute.xlu0 %189
  %192 = vset.pattern.permute.xlu0 3
  %193 = vperm.xlu0 %192, %v23
  %v194 = vpop.permute.xlu0 %193
  %196 = vset.pattern.permute.xlu0 3
  %197 = vperm.xlu0 %196, %v24
  %v198 = vpop.permute.xlu0 %197
  %200 = vset.pattern.permute.xlu0 3
  %201 = vperm.xlu0 %200, %v25
  %v202 = vpop.permute.xlu0 %201
  %204 = vset.pattern.permute.xlu0 3
  %205 = vperm.xlu0 %204, %v26
  %v206 = vpop.permute.xlu0 %205
  %v208 = vlaneseq
  %v209 = vshrl.u32 %v208, 7
  %v210 = vsub.s32 3, %v209
  %v211 = vrot.slane %v27, %v210
  %v212 = vmul.f32 %v182, %v211
  %v213 = vmul.f32 %v186, %v211
  %v214 = vmul.f32 %v190, %v211
  %v215 = vmul.f32 %v194, %v211
  %v216 = vmul.f32 %v198, %v211
  %v217 = vmul.f32 %v202, %v211
  %v218 = vmul.f32 %v206, %v211
  %v219 = vadd.f32 %v173, %v212
  %v220 = vadd.f32 %v174, %v213
  %v221 = vadd.f32 %v175, %v214
  %v222 = vadd.f32 %v176, %v215
  %v223 = vadd.f32 %v177, %v216
  %v224 = vadd.f32 %v178, %v217
  %v225 = vadd.f32 %v179, %v218
  %v226 = vmax.f32 %v219, 0.0
  %v227 = vmax.f32 %v220, 0.0
  %v228 = vmax.f32 %v221, 0.0
  %v229 = vmax.f32 %v222, 0.0
  %v230 = vmax.f32 %v223, 0.0
  %v231 = vmax.f32 %v224, 0.0
  %v232 = vmax.f32 %v225, 0.0
  %v233 = vld [vmem:[%s3] sm:$0xff]
  %v234 = vld [vmem:[%s3 + $0x8] sm:$0xff]
  %v235 = vld [vmem:[%s3 + $0x10] sm:$0xff]
  %v236 = vld [vmem:[%s3 + $0x18] sm:$0xff]
  %v237 = vld [vmem:[%s3 + $0x20] sm:$0xff]
  %v238 = vld [vmem:[%s3 + $0x28] sm:$0xff]
  %v239 = vld [vmem:[%s3 + $0x30] sm:$0x3]
  %v240 = vld [vmem:[%s4] sm:$0x1]
  %v242 = vlaneseq
  %v243 = vshrl.u32 %v242, 7
  %v244 = vsub.s32 0, %v243
  %v245 = vrot.slane %v240, %v244
  %vm247 = vcmask 408576
  %v249 = vsel %vm247, %v226, 0
  %v252 = vsel %vm247, %v227, 0
  %v255 = vsel %vm247, %v228, 0
  %v258 = vsel %vm247, %v229, 0
  %v261 = vsel %vm247, %v230, 0
  %v264 = vsel %vm247, %v231, 0
  %v267 = vsel %vm247, %v232, 0
  %vm269 = vcmask 1041408
  %v271 = vsel %vm269, %v239, 0
  %273 = vmatprep.subr.mxu0 0.0
  %274 = vmatpush1.msra.mxu0 %v233
  %275 = vmatprep.subr.mxu0 0.0
  %276 = vmatpush1.msra.mxu0 %v234
  %277 = vmatprep.subr.mxu0 0.0
  %278 = vmatpush1.msra.mxu0 %v235
  %279 = vmatprep.subr.mxu0 0.0
  %280 = vmatpush1.msra.mxu0 %v236
  %281 = vmatprep.subr.mxu0 0.0
  %282 = vmatpush1.msra.mxu0 %v237
  %283 = vmatprep.subr.mxu0 0.0
  %284 = vmatpush1.msra.mxu0 %v238
  %285 = vmatprep.subr.mxu0 0.0
  %286 = vmatpush1.msra.mxu0 %v271
  %287 = vmatprep.subr.mxu0 0.0
  %288 = vmatpush1.msra.mxu0 0.0
  %289 = vmatprep.subr.mxu0 0.0
  %290 = vmatpush1.msra.mxu0 0.0
  %291 = vmatprep.subr.mxu0 0.0
  %292 = vmatpush1.msra.mxu0 0.0
  %293 = vmatprep.subr.mxu0 0.0
  %294 = vmatpush1.msra.mxu0 0.0
  %295 = vmatprep.subr.mxu0 0.0
  %296 = vmatpush1.msra.mxu0 0.0
  %297 = vmatprep.subr.mxu0 0.0
  %298 = vmatpush1.msra.mxu0 0.0
  %299 = vmatprep.subr.mxu0 0.0
  %300 = vmatpush1.msra.mxu0 0.0
  %301 = vmatprep.subr.mxu0 0.0
  %302 = vmatpush1.msra.mxu0 0.0
  %303 = vmatprep.subr.mxu0 0.0
  %304 = vmatpush1.msra.mxu0 0.0
  %305 = vmatprep.subr.mxu0 0.0
  %306 = vmatpush1.msra.mxu0 0.0
  %307 = vmatprep.subr.mxu0 0.0
  %308 = vmatpush1.msra.mxu0 0.0
  %309 = vmatprep.subr.mxu0 0.0
  %310 = vmatpush1.msra.mxu0 0.0
  %311 = vmatprep.subr.mxu0 0.0
  %312 = vmatpush1.msra.mxu0 0.0
  %313 = vmatprep.subr.mxu0 0.0
  %314 = vmatpush1.msra.mxu0 0.0
  %315 = vmatprep.subr.mxu0 0.0
  %316 = vmatpush1.msra.mxu0 0.0
  %317 = vmatprep.subr.mxu0 0.0
  %318 = vmatpush1.msra.mxu0 0.0
  %319 = vmatprep.subr.mxu0 0.0
  %320 = vmatpush1.msra.mxu0 0.0
  %321 = vmatprep.subr.mxu0 0.0
  %322 = vmatpush1.msra.mxu0 0.0
  %323 = vmatprep.subr.mxu0 0.0
  %324 = vmatpush1.msra.mxu0 0.0
  %325 = vmatprep.subr.mxu0 0.0
  %326 = vmatpush1.msra.mxu0 0.0
  %327 = vmatprep.subr.mxu0 0.0
  %328 = vmatpush1.msra.mxu0 0.0
  %329 = vmatprep.subr.mxu0 0.0
  %330 = vmatpush1.msra.mxu0 0.0
  %331 = vmatprep.subr.mxu0 0.0
  %332 = vmatpush1.msra.mxu0 0.0
  %333 = vmatprep.subr.mxu0 0.0
  %334 = vmatpush1.msra.mxu0 0.0
  %335 = vmatprep.subr.mxu0 0.0
  %336 = vmatpush1.msra.mxu0 0.0
  %337 = vmatprep.mubr.f32.mxu0 0.0
  %338 = vmatmul.mubr.f32.gmra.mrb[0].mxu0 %v249
  %v339 = vpop.f32.mrb[0].mxu0
  %v340 = vadd.f32 %v245, %v339
  %v341 = vpop.f32.mrb[0].mxu0
  %342 = vmatprep.mubr.f32.mxu0 0.0
  %343 = vmatmul.mubr.f32.gmra.mrb[0].mxu0 %v252
  %v344 = vpop.f32.mrb[0].mxu0
  %v345 = vadd.f32 %v245, %v344
  %v346 = vpop.f32.mrb[0].mxu0
  %347 = vmatprep.mubr.f32.mxu0 0.0
  %348 = vmatmul.mubr.f32.gmra.mrb[0].mxu0 %v255
  %v349 = vpop.f32.mrb[0].mxu0
  %v350 = vadd.f32 %v245, %v349
  %v351 = vpop.f32.mrb[0].mxu0
  %352 = vmatprep.mubr.f32.mxu0 0.0
  %353 = vmatmul.mubr.f32.gmra.mrb[0].mxu0 %v258
  %v354 = vpop.f32.mrb[0].mxu0
  %v355 = vadd.f32 %v245, %v354
  %v356 = vpop.f32.mrb[0].mxu0
  %357 = vmatprep.mubr.f32.mxu0 0.0
  %358 = vmatmul.mubr.f32.gmra.mrb[0].mxu0 %v261
  %v359 = vpop.f32.mrb[0].mxu0
  %v360 = vadd.f32 %v245, %v359
  %v361 = vpop.f32.mrb[0].mxu0
  %362 = vmatprep.mubr.f32.mxu0 0.0
  %363 = vmatmul.mubr.f32.gmra.mrb[0].mxu0 %v264
  %v364 = vpop.f32.mrb[0].mxu0
  %v365 = vadd.f32 %v245, %v364
  %v366 = vpop.f32.mrb[0].mxu0
  %367 = vmatprep.mubr.f32.mxu0 0.0
  %368 = vmatmul.mubr.f32.gmra.mrb[0].mxu0 %v267
  %v369 = vpop.f32.mrb[0].mxu0
  %v370 = vadd.f32 %v245, %v369
  %v371 = vpop.f32.mrb[0].mxu0
  %372 = vdwg.mxu0
  %vm373 = vcmask 15360
  %374 = vst.msk [vmem:[%s5] sm:$0xff] %vm373, %v340
  %375 = vst.msk [vmem:[%s5 + $0x8] sm:$0xff] %vm373, %v345
  %376 = vst.msk [vmem:[%s5 + $0x10] sm:$0xff] %vm373, %v350
  %377 = vst.msk [vmem:[%s5 + $0x18] sm:$0xff] %vm373, %v355
  %378 = vst.msk [vmem:[%s5 + $0x20] sm:$0xff] %vm373, %v360
  %379 = vst.msk [vmem:[%s5 + $0x28] sm:$0xff] %vm373, %v365
  %380 = vst.msk [vmem:[%s5 + $0x30] sm:$0xff] %vm373, %v370
  // Predicated region
  $region22: #{tpu_custom_call.1} parent=0 // pred_check
    _
  $region23: #{tpu_custom_call.1} parent=0 // pred_check_branch
    %382 = sbr.rel (0) target = $region25
  $region24: #{tpu_custom_call.1} parent=0 // pred_region
    _
  $region25: #{tpu_custom_call.1} parent=0 // pred_fallthru
    _
  // Predicated region
  $region26: #{tpu_custom_call.1} parent=0 // pred_check
    _
  $region27: #{tpu_custom_call.1} parent=0 // pred_check_branch
    %384 = sbr.rel (0) target = $region29
  $region28: #{tpu_custom_call.1} parent=0 // pred_region
    _
  $region29: #{tpu_custom_call.1} parent=0 // pred_fallthru
    _

</llo_original>
